<compile_context>
chip_gen: v6e
topology: v6e:2x2x1
jax: 0.10.0
libtpu: 0.0.40
codegen_flags: <defaults>
</compile_context>

<pallas_src>
import jax
import jax.numpy as jnp
import numpy as np
from jax import lax
from jax.experimental import pallas as pl
from jax.experimental.pallas import tpu as pltpu

_LANE = 128          # batch (lane) padding granularity
_SMALL_BATCH = 128   # at/below this, a single grid step: plain XLA is as fast


# ---------------------------------------------------------------------------
# Small host-side helpers
# ---------------------------------------------------------------------------
def _round_up(x, m):
    return (x + m - 1) // m * m


def _batch_tiling(B):
    """(padded batch Bp, lane tile TB).  Batch lives on the lane axis, so Bp is
    a multiple of 128.  TB is as large as possible (<=1024 lanes) while keeping
    the grid length >= 2 whenever Bp has >= 2 lane-chunks, so v7x's two
    TensorCores both get work; on v5e/v6e (1 TC) that constraint is harmless."""
    Bp = _round_up(max(B, 1), _LANE)
    chunks = Bp // _LANE
    if chunks <= 1:
        return Bp, Bp
    max_tb_chunks = min(8, chunks // 2)          # tile <= 1024 lanes, grid >= 2
    tb_chunks = 1
    for c in range(max_tb_chunks, 0, -1):        # largest divisor -> no extra pad
        if chunks % c == 0:
            tb_chunks = c
            break
    return Bp, tb_chunks * _LANE


def _pad_cols(a, n):
    """Zero-pad the last (lane/batch) dim up to n."""
    b = a.shape[-1]
    if b == n:
        return a
    return jnp.pad(a, [(0, 0)] * (a.ndim - 1) + [(0, n - b)])


def _resident(shape):
    """Whole-array block with a constant block index: the operand stays
    VMEM-resident across all batch-grid steps (no per-step re-DMA)."""
    zeros = (0,) * len(shape)
    return pl.BlockSpec(shape, lambda i: zeros)


# ---------------------------------------------------------------------------
# Kernel math (batch on lanes; shared by single-branch and fused kernels)
# ---------------------------------------------------------------------------
def _listener_math(ids, tbl_t):
    """color^T = T^T @ onehot^T  with T = tanh(emb) @ W_ce^T + b_ce (host-side).
    One-hot selection on the MXU is exact, so this matches the reference."""
    M = tbl_t.shape[1]
    TB = ids.shape[1]
    iota = lax.broadcasted_iota(jnp.int32, (M, TB), 0)          # sublane iota
    onehot = (iota == ids).astype(tbl_t.dtype)                  # (M, TB)
    return jnp.dot(tbl_t, onehot, preferred_element_type=jnp.float32)  # (C, TB)


def _speaker_math(x_t, w_pe, b_pe, w_mc, b_mc, inv_tau):
    """probs^T = softmax((W_mc @ tanh(W_pe @ x^T + b_pe) + b_mc) * inv_tau, axis=0)."""
    h = jnp.tanh(jnp.dot(w_pe, x_t, preferred_element_type=jnp.float32) + b_pe)
    logits = (jnp.dot(w_mc, h, preferred_element_type=jnp.float32) + b_mc) * inv_tau
    m = jnp.max(logits, axis=0, keepdims=True)                  # (1, TB) sublane reduce
    e = jnp.exp(logits - m)
    inv = pl.reciprocal(jnp.sum(e, axis=0, keepdims=True))      # exact 1/x on (1, TB)
    return e * inv                                              # (msg_dim, TB)


def _msg_kernel(ids_ref, tbl_ref, out_ref):
    out_ref[...] = _listener_math(ids_ref[...], tbl_ref[...])


def _perception_kernel(inv_tau_ref, x_ref, w_pe_ref, b_pe_ref, w_mc_ref,
                       b_mc_ref, out_ref):
    out_ref[...] = _speaker_math(x_ref[...], w_pe_ref[...], b_pe_ref[...],
                                 w_mc_ref[...], b_mc_ref[...], inv_tau_ref[0, 0])


def _fused_kernel(inv_tau_ref, ids_ref, x_ref, tbl_ref, w_pe_ref, b_pe_ref,
                  w_mc_ref, b_mc_ref, out_ref):
    C = tbl_ref.shape[0]
    M = w_mc_ref.shape[0]
    out_ref[0:C, :] = _listener_math(ids_ref[...], tbl_ref[...])
    out_ref[C:C + M, :] = _speaker_math(x_ref[...], w_pe_ref[...], b_pe_ref[...],
                                        w_mc_ref[...], b_mc_ref[...],
                                        inv_tau_ref[0, 0])


# ---------------------------------------------------------------------------
# pallas_call wrappers (jitted; only per-batch transpose/pad + output slice
# remain here - all weight prep is hoisted to __init__)
# ---------------------------------------------------------------------------
@jax.jit
def _msg_forward_pallas(msg, tbl_t):
    B = msg.shape[0]
    C, M = tbl_t.shape
    Bp, TB = _batch_tiling(B)
    ids = _pad_cols(msg.astype(jnp.int32).reshape(1, B), Bp)          # (1, Bp)
    out = pl.pallas_call(
        _msg_kernel,
        grid=(Bp // TB,),
        in_specs=[pl.BlockSpec((1, TB), lambda i: (0, i)),
                  _resident((C, M))],
        out_specs=pl.BlockSpec((C, TB), lambda i: (0, i)),
        out_shape=jax.ShapeDtypeStruct((C, Bp), jnp.float32),
        compiler_params=pltpu.CompilerParams(dimension_semantics=("parallel",)),
    )(ids, tbl_t)
    return out[:, :B].T                                               # (B, C)


@jax.jit
def _perception_forward_pallas(x, w_pe, b_pe_col, w_mc, b_mc_col, tau):
    B, P = x.shape
    H = w_pe.shape[0]
    M = w_mc.shape[0]
    Bp, TB = _batch_tiling(B)
    x_t = _pad_cols(x.astype(jnp.float32).T, Bp)                      # (P, Bp)
    inv_tau = (jnp.float32(1.0) / jnp.asarray(tau, jnp.float32)).reshape(1, 1)
    out = pl.pallas_call(
        _perception_kernel,
        grid=(Bp // TB,),
        in_specs=[pl.BlockSpec(memory_space=pltpu.MemorySpace.SMEM),  # inv_tau scalar
                  pl.BlockSpec((P, TB), lambda i: (0, i)),
                  _resident((H, P)),
                  _resident((H, 1)),
                  _resident((M, H)),
                  _resident((M, 1))],
        out_specs=pl.BlockSpec((M, TB), lambda i: (0, i)),
        out_shape=jax.ShapeDtypeStruct((M, Bp), jnp.float32),
        compiler_params=pltpu.CompilerParams(dimension_semantics=("parallel",)),
    )(inv_tau, x_t, w_pe, b_pe_col, w_mc, b_mc_col)
    return out[:, :B].T                                               # (B, M)


@jax.jit
def _fused_forward_pallas(msg, x, tbl_t, w_pe, b_pe_col, w_mc, b_mc_col, tau):
    B = msg.shape[0]
    P = x.shape[1]
    H = w_pe.shape[0]
    C, _ = tbl_t.shape
    M = w_mc.shape[0]
    Bp, TB = _batch_tiling(B)
    ids = _pad_cols(msg.astype(jnp.int32).reshape(1, B), Bp)
    x_t = _pad_cols(x.astype(jnp.float32).T, Bp)
    inv_tau = (jnp.float32(1.0) / jnp.asarray(tau, jnp.float32)).reshape(1, 1)
    out = pl.pallas_call(
        _fused_kernel,
        grid=(Bp // TB,),
        in_specs=[pl.BlockSpec(memory_space=pltpu.MemorySpace.SMEM),
                  pl.BlockSpec((1, TB), lambda i: (0, i)),
                  pl.BlockSpec((P, TB), lambda i: (0, i)),
                  _resident((C, M)),
                  _resident((H, P)),
                  _resident((H, 1)),
                  _resident((M, H)),
                  _resident((M, 1))],
        out_specs=pl.BlockSpec((C + M, TB), lambda i: (0, i)),        # packed output
        out_shape=jax.ShapeDtypeStruct((C + M, Bp), jnp.float32),
        compiler_params=pltpu.CompilerParams(dimension_semantics=("parallel",)),
    )(inv_tau, ids, x_t, tbl_t, w_pe, b_pe_col, w_mc, b_mc_col)
    return out[:C, :B].T, out[C:, :B].T


# Pure-XLA paths (used for B <= 128, where one grid step of fixed dispatch
# plus pad/transpose passes would dominate; also serve as the reference).
@jax.jit
def _msg_forward_xla(msg, emb, w_ce, b_ce):
    return jnp.tanh(emb[msg]) @ w_ce.T + b_ce


@jax.jit
def _perception_forward_xla(x, w_pe, b_pe, w_mc, b_mc, tau):
    h = jnp.tanh(x @ w_pe.T + b_pe)
    return jax.nn.softmax((h @ w_mc.T + b_mc) / tau, axis=1)


# ---------------------------------------------------------------------------
# Module
# ---------------------------------------------------------------------------
class BasicAgentPallas:
    """Weights are stored in PyTorch layout (out_features, in_features), which
    is exactly the operand layout the lane-major (batch-on-lanes) kernels want."""

    def __init__(self, msg_dim, hidden_dim, color_dim, perception_dim, key):
        k = jax.random.split(key, 7)

        def linear_init(kw, kb, fan_in, fan_out):
            bound = 1.0 / np.sqrt(fan_in)
            w = jax.random.uniform(kw, (fan_out, fan_in), jnp.float32, -bound, bound)
            b = jax.random.uniform(kb, (fan_out,), jnp.float32, -bound, bound)
            return w, b

        self.msg_dim = msg_dim
        self.hidden_dim = hidden_dim
        self.color_dim = color_dim
        self.perception_dim = perception_dim

        # nn.Embedding(msg_dim, hidden_dim): N(0, 1)
        self.emb = jax.random.normal(k[0], (msg_dim, hidden_dim), jnp.float32)
        # nn.Linear(hidden_dim, color_dim)
        self.w_ce, self.b_ce = linear_init(k[1], k[2], hidden_dim, color_dim)
        # nn.Linear(perception_dim, hidden_dim)
        self.w_pe, self.b_pe = linear_init(k[3], k[4], perception_dim, hidden_dim)
        # nn.Linear(hidden_dim, msg_dim)
        self.w_mc, self.b_mc = linear_init(k[5], k[6], hidden_dim, msg_dim)

        # --- static kernel-operand prep, hoisted out of the per-call path ---
        # Listener table: row m = tanh(emb[m]) @ W_ce^T + b_ce  (exact per-row
        # op sequence of the reference); stored transposed as (color, msg).
        self.tbl_t = (jnp.tanh(self.emb) @ self.w_ce.T + self.b_ce).T
        self.b_pe_col = self.b_pe.reshape(hidden_dim, 1)
        self.b_mc_col = self.b_mc.reshape(msg_dim, 1)

    def forward(self, perception=None, msg=None, tau=1):
        if msg is not None:
            if msg.shape[0] <= _SMALL_BATCH:
                return _msg_forward_xla(msg, self.emb, self.w_ce, self.b_ce)
            return _msg_forward_pallas(msg, self.tbl_t)
        if perception is not None:
            if perception.shape[0] <= _SMALL_BATCH:
                return _perception_forward_xla(perception, self.w_pe, self.b_pe,
                                               self.w_mc, self.b_mc,
                                               jnp.float32(tau))
            return _perception_forward_pallas(perception, self.w_pe, self.b_pe_col,
                                              self.w_mc, self.b_mc_col,
                                              jnp.float32(tau))

    def forward_both(self, perception, msg, tau=1):
        """Both branches in ONE pallas_call with a single packed dense output."""
        assert perception.shape[0] == msg.shape[0], "fused path needs equal batch"
        if msg.shape[0] <= _SMALL_BATCH:
            return (_msg_forward_xla(msg, self.emb, self.w_ce, self.b_ce),
                    _perception_forward_xla(perception, self.w_pe, self.b_pe,
                                            self.w_mc, self.b_mc, jnp.float32(tau)))
        return _fused_forward_pallas(msg, perception, self.tbl_t, self.w_pe,
                                     self.b_pe_col, self.w_mc, self.b_mc_col,
                                     jnp.float32(tau))

    # pure-JAX reference mirroring the PyTorch forward exactly (for testing)
    def forward_ref(self, perception=None, msg=None, tau=1):
        if msg is not None:
            h = jnp.tanh(self.emb[msg])
            return h @ self.w_ce.T + self.b_ce
        if perception is not None:
            h = jnp.tanh(perception @ self.w_pe.T + self.b_pe)
            return jax.nn.softmax((h @ self.w_mc.T + self.b_mc) / tau, axis=1)


# ---------------------------------------------------------------------------
if __name__ == "__main__":
    MSG_DIM, HIDDEN_DIM, COLOR_DIM, PERCEPTION_DIM = 16, 32, 8, 16

    key = jax.random.PRNGKey(0)
    k_param, k_msg, k_perc = jax.random.split(key, 3)
    agent = BasicAgentPallas(MSG_DIM, HIDDEN_DIM, COLOR_DIM, PERCEPTION_DIM, k_param)

    B = 512  # Pallas path: Bp=512 -> TB=256 lanes, grid=2 (both v7x TCs busy)
    msg = jax.random.randint(k_msg, (B,), 0, MSG_DIM, dtype=jnp.int32)
    perception = jax.random.normal(k_perc, (B, PERCEPTION_DIM), jnp.float32)
    tau = 0.7

    # msg (listener) branch
    color_logits = jax.block_until_ready(agent.forward(msg=msg))
    np.testing.assert_allclose(np.asarray(color_logits),
                               np.asarray(agent.forward_ref(msg=msg)),
                               rtol=1e-5, atol=1e-5)
    assert color_logits.shape == (B, COLOR_DIM)

    # perception (speaker) branch
    probs = jax.block_until_ready(agent.forward(perception=perception, tau=tau))
    np.testing.assert_allclose(np.asarray(probs),
                               np.asarray(agent.forward_ref(perception=perception, tau=tau)),
                               rtol=1e-5, atol=1e-5)
    assert probs.shape == (B, MSG_DIM)

    # fused single-call version (one packed dense output)
    cl2, pr2 = jax.block_until_ready(
        agent.forward_both(perception=perception, msg=msg, tau=tau))
    np.testing.assert_allclose(np.asarray(cl2),
                               np.asarray(agent.forward_ref(msg=msg)),
                               rtol=1e-5, atol=1e-5)
    np.testing.assert_allclose(np.asarray(pr2),
                               np.asarray(agent.forward_ref(perception=perception, tau=tau)),
                               rtol=1e-5, atol=1e-5)

    # ragged batch > 128: exercises the lane-padding path inside the kernels
    Br = 200
    cr = jax.block_until_ready(agent.forward(msg=msg[:Br]))
    np.testing.assert_allclose(np.asarray(cr),
                               np.asarray(agent.forward_ref(msg=msg[:Br])),
                               rtol=1e-5, atol=1e-5)
    pr = jax.block_until_ready(agent.forward(perception=perception[:Br], tau=tau))
    np.testing.assert_allclose(np.asarray(pr),
                               np.asarray(agent.forward_ref(perception=perception[:Br], tau=tau)),
                               rtol=1e-5, atol=1e-5)

    # tiny batch: dispatcher bypasses Pallas (single grid step) but stays correct
    small = jax.block_until_ready(agent.forward(msg=msg[:5]))
    np.testing.assert_allclose(np.asarray(small),
                               np.asarray(agent.forward_ref(msg=msg[:5])),
                               rtol=1e-5, atol=1e-5)
    # also exercise the Pallas grid=1 / padded path directly to keep it covered
    small_p = jax.block_until_ready(_msg_forward_pallas(msg[:5], agent.tbl_t))
    np.testing.assert_allclose(np.asarray(small_p),
                               np.asarray(agent.forward_ref(msg=msg[:5])),
                               rtol=1e-5, atol=1e-5)

    print("KERNEL_OK")
</pallas_src>

<mosaic_0001>
module attributes {stable_mosaic.version = 11 : i64} {
  func.func @_msg_kernel(%arg0: i32, %arg1: memref<1x256xi32, #tpu.memory_space<vmem>>, %arg2: memref<8x16xf32, #tpu.memory_space<vmem>>, %arg3: memref<8x256xf32, #tpu.memory_space<vmem>>) attributes {dimension_semantics = [#tpu.dimension_semantics<parallel>], iteration_bounds = array<i64: 2>, scalar_prefetch = 0 : i64, scratch_operands = 0 : i64, tpu.core_type = #tpu.core_type<tc>, window_params = [{transform_indices = @transform_0, window_bounds = array<i64: 1, 256>}, {pipeline_mode = #tpu.pipeline_mode<synchronous>, transform_indices = @transform_1, window_bounds = array<i64: 8, 16>}, {transform_indices = @transform_2, window_bounds = array<i64: 8, 256>}]} {
    %c0 = arith.constant 0 : index
    %c0_0 = arith.constant 0 : index
    %0 = vector.load %arg1[%c0, %c0_0] : memref<1x256xi32, #tpu.memory_space<vmem>>, vector<1x256xi32>
    %c0_1 = arith.constant 0 : index
    %c0_2 = arith.constant 0 : index
    %1 = vector.load %arg2[%c0_1, %c0_2] : memref<8x16xf32, #tpu.memory_space<vmem>>, vector<8x16xf32>
    %2 = tpu.iota {dimensions = array<i32: 0>} : vector<16x256xi32>
    %3 = vector.broadcast %0 : vector<1x256xi32> to vector<16x256xi32>
    %4 = arith.cmpi eq, %2, %3 : vector<16x256xi32>
    %5 = arith.extui %4 : vector<16x256xi1> to vector<16x256xi32>
    %6 = arith.sitofp %5 : vector<16x256xi32> to vector<16x256xf32>
    %cst = arith.constant dense<0.000000e+00> : vector<8x256xf32>
    %7 = tpu.matmul %1, %6, %cst {dimension_numbers = #tpu.dot_dimension_numbers<[1], [0], [0], [1], [0, 0, 1, 1], [], []>} : vector<8x16xf32>, vector<16x256xf32>, vector<8x256xf32> -> vector<8x256xf32>
    %c0_3 = arith.constant 0 : index
    %c0_4 = arith.constant 0 : index
    %8 = vector.load %arg3[%c0_3, %c0_4] : memref<8x256xf32, #tpu.memory_space<vmem>>, vector<8x256xf32>
    tpu.vector_store %arg3[%c0_3, %c0_4], %7 {strides = array<i32>} : memref<8x256xf32, #tpu.memory_space<vmem>>, vector<8x256xf32>,
    return
  }
  func.func @transform_0(%arg0: i32) -> (i32, i32) {
    %c0_i32 = arith.constant 0 : i32
    %c0_i32_0 = arith.constant 0 : i32
    return %c0_i32, %arg0 : i32, i32
  }
  func.func @transform_1(%arg0: i32) -> (i32, i32) {
    %c0_i32 = arith.constant 0 : i32
    %c0_i32_0 = arith.constant 0 : i32
    %c0_i32_1 = arith.constant 0 : i32
    return %c0_i32, %c0_i32_0 : i32, i32
  }
  func.func @transform_2(%arg0: i32) -> (i32, i32) {
    %c0_i32 = arith.constant 0 : i32
    %c0_i32_0 = arith.constant 0 : i32
    return %c0_i32, %arg0 : i32, i32
  }
}

</mosaic_0001>

<llo_original>
// kernel: _msg_forward_pallas.1
$region0: #{_msg_forward_pallas.1}
  #allocation0 [shape = 'u32[]', space=smem, size = 0x4, offset = 0x4, fixed_abs, tag = 'smem constant byte address 0x4 - core index']
  #allocation1 [shape = 'u32[144,128]{1,0:T(1,128)}', space=vmem, size = 0x12000, scoped, tag = 'internal scratch']
  %s0 = inlined_call_operand.hbm [shape: s32[1,512], index: 0, kind: input, shape index: {}]
  %s1 = inlined_call_operand.hbm [shape: f32[8,16], index: 1, kind: input, shape index: {}]
  %s2 = inlined_call_operand.hbm [shape: f32[8,512], index: 2, kind: output, shape index: {}]
  %s3 = sld [smem:[#allocation0]]
  $region49: #{_msg_forward_pallas.1} parent=0
    _
  %s5 = ssub.s32 1, %s3
  %s6 = scalar_select 0, %s5, %s3
  $region1: #{_msg_forward_pallas.1} parent=0
    #allocation2 [shape = 'u8[2048]{0}', space=vmem, size = 0x800, scoped, tag = 'input window, operand 0']
    #allocation3 [shape = 's32[2]{0}', space=sflag, size = 0x8, scoped, tag = 'scoped memory for _msg_forward_pallas.1']
    #allocation4 [shape = 's32[2]{0}', space=sflag, size = 0x8, scoped, tag = 'scoped memory for _msg_forward_pallas.1']
    #allocation5 [shape = 'u8[4096]{0}', space=vmem, size = 0x1000, scoped, tag = 'input window, operand 1, single buffered']
    #allocation6 [shape = 's32[1]{0}', space=sflag, size = 0x4, scoped, tag = 'scoped memory for _msg_forward_pallas.1']
    #allocation7 [shape = 'u8[16384]{0}', space=vmem, size = 0x4000, scoped, tag = 'output window, operand 0']
    %7 = vsyncpa [#allocation3], 0
    %s8 = scalar_lea.sflag [#allocation3], 1
    %9 = vsyncpa %s8, 0
    %10 = vsyncpa [#allocation6], 0
    %11 = vsyncpa [#allocation4], 0
    %s12 = scalar_lea.sflag [#allocation4], 1
    %13 = vsyncpa %s12, 0
    loop: start=0, step=1, limit=4
    $region2: #{_msg_forward_pallas.1} parent=1 // loop_pre_header
      _
    $region3: #{_msg_forward_pallas.1} parent=1 // loop_header
      %s15 = sphi 0, %s19
      %p16 = scmp.ge.s32.totalorder %s15, 4
      %s25 = sphi 0, %s27
      %s28 = sphi 0, %s25
      %s29 = sphi 0, %s28
      %s45 = sphi 0, %s29
      %s49 = sphi 0, %s49
      %s51 = sphi 0, %s49
      %s52 = sphi 0, %s51
      %s66 = sphi 0, %s52
      %s72 = sphi 0, %s74
      %s75 = sphi 0, %s72
      %s76 = sphi 0, %s75
      %s92 = sphi 0, %s76
    $region4: #{_msg_forward_pallas.1} parent=1 // loop_header_branch
      %18 = sbr.rel (%p16) target = $region8
    $region5: #{_msg_forward_pallas.1} parent=1 // loop_body
      %s20 = ssub.s32 %s15, 1
      %s21 = ssub.s32 %s15, 2
      %s22 = sadd.s32 %s15, 1
      %s23 = ssub.s32 %s15, %s22
      %p24 = scmp.eq.s32.totalorder %s23, 0
      %s26 = sadd.s32 %s25, 1
      %s27 = scalar_select %p24, %s25, %s26
      %p30 = pneg %p24
      %p31 = scmp.eq.s32.totalorder %s15, 1
      %p32 = por %p30, %p31
      %p33 = scmp.ne.s32.totalorder %s25, %s28
      %p34 = scmp.eq.s32.totalorder %s15, 0
      %p35 = por %p33, %p34
      %p36 = scmp.ne.s32.totalorder %s25, %s28
      %p37 = scmp.eq.s32.totalorder %s20, 1
      %p38 = por %p36, %p37
      %p39 = scmp.ne.s32.totalorder %s28, %s29
      %p40 = scmp.eq.s32.totalorder %s20, 0
      %p41 = por %p39, %p40
      %p42 = scmp.ne.s32.totalorder %s28, %s29
      %p43 = scmp.eq.s32.totalorder %s21, 1
      %p44 = por %p42, %p43
      %p46 = scmp.ne.s32.totalorder %s29, %s45
      %p47 = scmp.eq.s32.totalorder %s21, 0
      %p48 = por %p46, %p47
      %s50 = sadd.s32 %s49, 1
      %p53 = scmp.eq.s32.totalorder %s15, 1
      %p54 = scmp.ne.s32.totalorder %s49, %s51
      %p55 = scmp.eq.s32.totalorder %s15, 0
      %p56 = por %p54, %p55
      %p57 = scmp.ne.s32.totalorder %s49, %s51
      %p58 = scmp.eq.s32.totalorder %s20, 1
      %p59 = por %p57, %p58
      %p60 = scmp.ne.s32.totalorder %s51, %s52
      %p61 = scmp.eq.s32.totalorder %s20, 0
      %p62 = por %p60, %p61
      %p63 = scmp.ne.s32.totalorder %s51, %s52
      %p64 = scmp.eq.s32.totalorder %s21, 1
      %p65 = por %p63, %p64
      %p67 = scmp.ne.s32.totalorder %s52, %s66
      %p68 = scmp.eq.s32.totalorder %s21, 0
      %p69 = por %p67, %p68
      %s70 = ssub.s32 %s15, %s22
      %p71 = scmp.eq.s32.totalorder %s70, 0
      %s73 = sadd.s32 %s72, 1
      %s74 = scalar_select %p71, %s72, %s73
      %p77 = pneg %p71
      %p78 = scmp.eq.s32.totalorder %s15, 1
      %p79 = por %p77, %p78
      %p80 = scmp.ne.s32.totalorder %s72, %s75
      %p81 = scmp.eq.s32.totalorder %s15, 0
      %p82 = por %p80, %p81
      %p83 = scmp.ne.s32.totalorder %s72, %s75
      %p84 = scmp.eq.s32.totalorder %s20, 1
      %p85 = por %p83, %p84
      %p86 = scmp.ne.s32.totalorder %s75, %s76
      %p87 = scmp.eq.s32.totalorder %s20, 0
      %p88 = por %p86, %p87
      %p89 = scmp.ne.s32.totalorder %s75, %s76
      %p90 = scmp.eq.s32.totalorder %s21, 1
      %p91 = por %p89, %p90
      %p93 = scmp.ne.s32.totalorder %s76, %s92
      %p94 = scmp.eq.s32.totalorder %s21, 0
      %p95 = por %p93, %p94
      %p96 = scmp.le.s32.totalorder 1, %s15
      %p97 = scmp.lt.s32.totalorder %s15, 3
      %p98 = pnand %p96, %p97
      %p99 = pneg %p98
      // Predicated region
      $region9: #{_msg_forward_pallas.1} parent=5 // pred_check
        _
      $region10: #{_msg_forward_pallas.1} parent=5 // pred_check_branch
        %101 = sbr.rel (%p98) target = $region12
      $region11: #{_msg_forward_pallas.1} parent=5 // pred_region
        %s102 = ssub.s32 %s15, 1
        // Predicated region
        $region13: #{_msg_forward_pallas.1} parent=11 // pred_check
          %p103 = pneg %p62
        $region14: #{_msg_forward_pallas.1} parent=11 // pred_check_branch
          %105 = sbr.rel (%p103) target = $region16
        $region15: #{_msg_forward_pallas.1} parent=11 // pred_region
          %s107 = ssub.s32 128, 128
          %108 = vsyncadd [#allocation6], %s107
          %s110 = sshll.u32 [#allocation5], 4
          %s111 = int_to_ptr.vmem [resolvable:$true] %s110
          %113 = dma.hbm_to_vmem [thread:$0]  %s1, 128, %s111, [#allocation6]
        $region16: #{_msg_forward_pallas.1} parent=11 // pred_fallthru
          _
      $region12: #{_msg_forward_pallas.1} parent=5 // pred_fallthru
        _
      %p114 = scmp.lt.s32.totalorder %s15, 2
      // Predicated region
      $region17: #{_msg_forward_pallas.1} parent=5 // pred_check
        %p115 = pneg %p114
      $region18: #{_msg_forward_pallas.1} parent=5 // pred_check_branch
        %117 = sbr.rel (%p115) target = $region20
      $region19: #{_msg_forward_pallas.1} parent=5 // pred_region
        // Predicated region
        $region21: #{_msg_forward_pallas.1} parent=19 // pred_check
          %p118 = pneg %p35
        $region22: #{_msg_forward_pallas.1} parent=19 // pred_check_branch
          %120 = sbr.rel (%p118) target = $region24
        $region23: #{_msg_forward_pallas.1} parent=19 // pred_region
          %s121 = sand.u32 %s25, 1
          %s122 = scalar_lea.sflag [#allocation3], %s121
          %s123 = sand.u32 %s25, 1
          %s124 = smul.addr %s123, 2
          %s125 = scalar_lea.vmem [#allocation2], %s124
          %s126 = smul.u32 2, %s15
          %s128 = ssub.s32 32, 32
          %129 = vsyncadd %s122, %s128
          %s130 = smul.addr %s126, 16
          %s131 = scalar_lea.hbm %s0, %s130
          %s133 = sshll.u32 %s125, 4
          %s134 = int_to_ptr.vmem [resolvable:$true] %s133
          %136 = dma.hbm_to_vmem [thread:$0]  %s131, 32, %s134, %s122
        $region24: #{_msg_forward_pallas.1} parent=19 // pred_fallthru
          _
      $region20: #{_msg_forward_pallas.1} parent=5 // pred_fallthru
        _
      %p137 = scmp.le.s32.totalorder 1, %s15
      %p138 = scmp.lt.s32.totalorder %s15, 3
      %p139 = pnand %p137, %p138
      %p140 = pneg %p139
      // Predicated region
      $region25: #{_msg_forward_pallas.1} parent=5 // pred_check
        _
      $region26: #{_msg_forward_pallas.1} parent=5 // pred_check_branch
        %142 = sbr.rel (%p139) target = $region28
      $region27: #{_msg_forward_pallas.1} parent=5 // pred_region
        %s143 = ssub.s32 %s15, 1
        %s144 = sand.u32 %s28, 1
        %s145 = scalar_lea.sflag [#allocation3], %s144
        %s146 = sand.u32 %s28, 1
        %s147 = smul.addr %s146, 2
        %s148 = scalar_lea.vmem [#allocation2], %s147
        // Predicated region
        $region29: #{_msg_forward_pallas.1} parent=27 // pred_check
          %p149 = pneg %p41
        $region30: #{_msg_forward_pallas.1} parent=27 // pred_check_branch
          %151 = sbr.rel (%p149) target = $region32
        $region31: #{_msg_forward_pallas.1} parent=27 // pred_region
          %152 = dma.done %s145, 32
        $region32: #{_msg_forward_pallas.1} parent=27 // pred_fallthru
          _
        // Predicated region
        $region33: #{_msg_forward_pallas.1} parent=27 // pred_check
          %p153 = pneg %p62
        $region34: #{_msg_forward_pallas.1} parent=27 // pred_check_branch
          %155 = sbr.rel (%p153) target = $region36
        $region35: #{_msg_forward_pallas.1} parent=27 // pred_region
          %156 = dma.done [#allocation6], 128
        $region36: #{_msg_forward_pallas.1} parent=27 // pred_fallthru
          _
        %s157 = sand.u32 %s28, 1
        %s158 = scalar_lea.sflag [#allocation3], %s157
        %s159 = sand.u32 %s28, 1
        %s160 = smul.addr %s159, 2
        %s161 = scalar_lea.vmem [#allocation2], %s160
        %p162 = pneg %p41
        %p163 = pneg %p38
        %p164 = pneg %p62
        %p165 = pneg %p59
        %p166 = pneg %p88
        %p167 = pneg %p85
        %s168 = sand.u32 %s75, 1
        %s169 = scalar_lea.sflag [#allocation4], %s168
        %s170 = sand.u32 %s75, 1
        %s171 = smul.addr %s170, 16
        %s172 = scalar_lea.vmem [#allocation7], %s171
        %s173 = smul.u32 2, %s20
        %s174 = smul.u32 2, %s20
        %v175 = vld [vmem:[%s148] sm:$0x3]
        %v176 = vld [vmem:[#allocation5] sm:$0xff]
        %v177 = vlaneseq
        %v178 = vshrl.u32 %v177, 7
        %v179 = vadd.s32 %v178, 8
        %v180 = vlaneseq
        %v181 = vshrl.u32 %v180, 7
        %v182 = vsub.s32 0, %v181
        %v183 = vrot.slane %v175, %v182
        %v184 = vlaneseq
        %v185 = vshrl.u32 %v184, 7
        %v186 = vsub.s32 1, %v185
        %v187 = vrot.slane %v175, %v186
        %vm188 = vcmp.eq.s32.totalorder %v178, %v183
        %vm189 = vcmp.eq.s32.totalorder %v178, %v187
        %vm190 = vcmp.eq.s32.totalorder %v179, %v183
        %vm191 = vcmp.eq.s32.totalorder %v179, %v187
        %v192 = vsel %vm188, 1, 0
        %v193 = vsel %vm189, 1, 0
        %v194 = vsel %vm190, 1, 0
        %v195 = vsel %vm191, 1, 0
        %v196 = vcvt.s32.f32 %v192
        %v197 = vcvt.s32.f32 %v193
        %v198 = vcvt.s32.f32 %v194
        %v199 = vcvt.s32.f32 %v195
        %vm200 = vcmask 130048
        %v202 = vsel %vm200, %v176, 0
        %204 = vmatprep.subr.mxu0 0.0
        %205 = vmatpush1.msra.mxu0 0.0
        %206 = vmatprep.subr.mxu0 0.0
        %207 = vmatpush1.msra.mxu0 0.0
        %208 = vmatprep.subr.mxu0 0.0
        %209 = vmatpush1.msra.mxu0 0.0
        %210 = vmatprep.subr.mxu0 0.0
        %211 = vmatpush1.msra.mxu0 0.0
        %212 = vmatprep.subr.mxu0 0.0
        %213 = vmatpush1.msra.mxu0 0.0
        %214 = vmatprep.subr.mxu0 0.0
        %215 = vmatpush1.msra.mxu0 0.0
        %216 = vmatprep.subr.mxu0 0.0
        %217 = vmatpush1.msra.mxu0 0.0
        %218 = vmatprep.subr.mxu0 0.0
        %219 = vmatpush1.msra.mxu0 0.0
        %220 = vmatprep.subr.mxu0 0.0
        %221 = vmatpush1.msra.mxu0 0.0
        %222 = vmatprep.subr.mxu0 0.0
        %223 = vmatpush1.msra.mxu0 0.0
        %224 = vmatprep.subr.mxu0 0.0
        %225 = vmatpush1.msra.mxu0 0.0
        %226 = vmatprep.subr.mxu0 0.0
        %227 = vmatpush1.msra.mxu0 0.0
        %228 = vmatprep.subr.mxu0 0.0
        %229 = vmatpush1.msra.mxu0 0.0
        %230 = vmatprep.subr.mxu0 0.0
        %231 = vmatpush1.msra.mxu0 0.0
        %232 = vmatprep.subr.mxu0 %v199
        %233 = vmatpush1.msra.mxu0 %v198
        %234 = vmatprep.subr.mxu0 %v197
        %235 = vmatpush1.msra.mxu0 %v196
        %236 = vmatprep.subr.mxu0 0.0
        %237 = vmatpush2.msra.mxu0 0.0
        %238 = vmatprep.subr.mxu0 0.0
        %239 = vmatpush2.msra.mxu0 0.0
        %240 = vmatprep.subr.mxu0 0.0
        %241 = vmatpush2.msra.mxu0 0.0
        %242 = vmatprep.subr.mxu0 0.0
        %243 = vmatpush2.msra.mxu0 0.0
        %244 = vmatprep.subr.mxu0 0.0
        %245 = vmatpush2.msra.mxu0 0.0
        %246 = vmatprep.subr.mxu0 0.0
        %247 = vmatpush2.msra.mxu0 0.0
        %248 = vmatprep.subr.mxu0 0.0
        %249 = vmatpush2.msra.mxu0 0.0
        %250 = vmatprep.subr.mxu0 0.0
        %251 = vmatpush2.msra.mxu0 0.0
        %252 = vmatprep.subr.mxu0 0.0
        %253 = vmatpush2.msra.mxu0 0.0
        %254 = vmatprep.subr.mxu0 0.0
        %255 = vmatpush2.msra.mxu0 0.0
        %256 = vmatprep.subr.mxu0 0.0
        %257 = vmatpush2.msra.mxu0 0.0
        %258 = vmatprep.subr.mxu0 0.0
        %259 = vmatpush2.msra.mxu0 0.0
        %260 = vmatprep.subr.mxu0 0.0
        %261 = vmatpush2.msra.mxu0 0.0
        %262 = vmatprep.subr.mxu0 0.0
        %263 = vmatpush2.msra.mxu0 0.0
        %264 = vmatprep.subr.mxu0 0.0
        %265 = vmatpush2.msra.mxu0 0.0
        %266 = vmatprep.subr.mxu0 0.0
        %267 = vmatpush2.msra.mxu0 0.0
        %268 = vmatprep.mubr.f32.mxu0 0.0
        %269 = vmatmul.mubr.f32.gmra.mxu0 %v202
        %v270 = vpop.f32.mrf.mxu0
        %v271 = vadd.f32 0.0, %v270
        %v272 = vpop.f32.mrf.mxu0
        %v273 = vadd.f32 0.0, %v272
        %274 = vdwg.mxu0
        %275 = vst [vmem:[%s172] sm:$0xff] %v271
        %276 = vst [vmem:[%s172 + $0x8] sm:$0xff] %v273
        %s277 = sand.u32 %s75, 1
        %s278 = scalar_lea.sflag [#allocation4], %s277
        %s279 = sand.u32 %s75, 1
        %s280 = smul.addr %s279, 16
        %s281 = scalar_lea.vmem [#allocation7], %s280
        // Predicated region
        $region37: #{_msg_forward_pallas.1} parent=27 // pred_check
          %p282 = pneg %p85
        $region38: #{_msg_forward_pallas.1} parent=27 // pred_check_branch
          %284 = sbr.rel (%p282) target = $region40
        $region39: #{_msg_forward_pallas.1} parent=27 // pred_region
          %s285 = smul.u32 2, %s20
          %s287 = ssub.s32 256, 256
          %288 = vsyncadd %s278, %s287
          %s289 = smul.addr %s285, 128
          %s290 = scalar_lea.hbm %s2, %s289
          %s292 = sshll.u32 %s281, 4
          %s293 = int_to_ptr.vmem [resolvable:$true] %s292
          %295 = dma.vmem_to_hbm [thread:$0]  %s293, 256, %s290, %s278
        $region40: #{_msg_forward_pallas.1} parent=27 // pred_fallthru
          _
      $region28: #{_msg_forward_pallas.1} parent=5 // pred_fallthru
        _
      %p296 = scmp.le.s32.totalorder 2, %s15
      // Predicated region
      $region41: #{_msg_forward_pallas.1} parent=5 // pred_check
        %p297 = pneg %p296
      $region42: #{_msg_forward_pallas.1} parent=5 // pred_check_branch
        %299 = sbr.rel (%p297) target = $region44
      $region43: #{_msg_forward_pallas.1} parent=5 // pred_region
        %s300 = ssub.s32 %s15, 2
        // Predicated region
        $region45: #{_msg_forward_pallas.1} parent=43 // pred_check
          %p301 = pneg %p91
        $region46: #{_msg_forward_pallas.1} parent=43 // pred_check_branch
          %303 = sbr.rel (%p301) target = $region48
        $region47: #{_msg_forward_pallas.1} parent=43 // pred_region
          %s304 = sand.u32 %s76, 1
          %s305 = scalar_lea.sflag [#allocation4], %s304
          %s306 = sand.u32 %s76, 1
          %s307 = smul.addr %s306, 16
          %s308 = scalar_lea.vmem [#allocation7], %s307
          %309 = dma.done %s305, 256
        $region48: #{_msg_forward_pallas.1} parent=43 // pred_fallthru
          _
      $region44: #{_msg_forward_pallas.1} parent=5 // pred_fallthru
        _
    $region6: #{_msg_forward_pallas.1} parent=1 // loop_footer
      %s19 = sadd.s32 1, %s15
    $region7: #{_msg_forward_pallas.1} parent=1 // loop_footer_branch
      %14 = sbr.rel target = $region3
    $region8: #{_msg_forward_pallas.1} parent=1 // loop_exit
      _
    %310 = vsyncpa [#allocation3], 1
    %s311 = scalar_lea.sflag [#allocation3], 1
    %312 = vsyncpa %s311, 1
    %313 = vsyncpa [#allocation6], 1
    %314 = vsyncpa [#allocation4], 1
    %s315 = scalar_lea.sflag [#allocation4], 1
    %316 = vsyncpa %s315, 1

</llo_original>
